<compile_context>
chip_gen: v7x
topology: tpu7x:2x2x1
jax: 0.10.0
libtpu: 0.0.40
codegen_flags: <defaults>
</compile_context>

<pallas_src>
import functools

import jax
import jax.numpy as jnp
from jax.experimental import pallas as pl
from jax.experimental.pallas import tpu as pltpu

_LANES = 128
_SUBLANES = 8


def _focal_loss_kernel(pred_ref, tgt_ref, out_ref, *, a_pos, a_neg, gamma,
                       tile_rows, valid_rows, need_mask):
    # pred_ref: (tile_rows, 128) f32/bf16   p = P(class == 1)
    # tgt_ref : (tile_rows, 128) int        target class in {0, 1}
    # out_ref : (1, 128) f32                per-tile, per-lane partial sums
    pred = pred_ref[...].astype(jnp.float32)
    is_pos = tgt_ref[...] != 0                      # one VPU compare, no int->f32 cast

    # prob of the target class, clamped like the PyTorch reference.
    probs = jnp.where(is_pos, pred, 1.0 - pred)
    probs = jnp.clip(probs, 0.0001, 1.0)
    log_p = jnp.log(probs)                          # the only EUP op per element

    omp = 1.0 - probs
    # (1 - probs)^gamma : explicit repeated multiply for small integer gamma (VPU),
    # general pow (exp/log on EUP) only as a fallback.
    if float(gamma).is_integer() and 0 <= int(gamma) <= 8:
        gi = int(gamma)
        mod = jnp.ones_like(omp) if gi == 0 else omp
        for _ in range(max(gi - 1, 0)):
            mod = mod * omp
    else:
        mod = omp ** jnp.float32(gamma)

    # a_pos / a_neg already carry the minus sign and (optional) 1/B scaling.
    coef = jnp.where(is_pos, jnp.float32(a_pos), jnp.float32(a_neg))
    term = coef * mod * log_p

    if need_mask:
        # Ragged edge block: zero rows past the real row count AFTER clip/log so
        # garbage (possibly NaN) out-of-bounds data cannot reach the sum.
        row = jax.lax.broadcasted_iota(jnp.int32, term.shape, 0)
        grow = pl.program_id(0) * tile_rows + row
        term = jnp.where(grow < valid_rows, term, jnp.float32(0.0))

    # Cross-vreg adds are VPU; only the final 8-sublane fold per lane hits the XLU.
    out_ref[...] = jnp.sum(term, axis=0, keepdims=True)


def focal_loss(pred, target, *, alpha=0.25, gamma=2, size_average=True,
               tile_rows=8192):
    """pred: array with exactly B elements (e.g. (B,) or (B,1)), values in [0,1];
    target: (B,) integer class ids in {0,1}. Returns scalar f32 loss.
    Pass target as int8 and/or pred as bfloat16 to cut HBM traffic further."""
    B = int(target.shape[0])
    if int(pred.size) != B:
        # TODO(synk): multi-column pred (view(B,-1) with K>1 in the PyTorch module)
        # is not supported; only the K=1 binary-probability case is implemented.
        raise ValueError(f"pred must have exactly {B} elements, got shape {pred.shape}")

    # Keep pred in bf16 if it already is (streams 2 B/elem); otherwise f32.
    if pred.dtype not in (jnp.float32, jnp.bfloat16):
        pred = pred.astype(jnp.float32)
    p = pred.reshape(B)

    # Target stays in its native integer dtype (no host-side conversion pass).
    if target.dtype == jnp.bool_:
        target = target.astype(jnp.int32)
    t = target.reshape(B)

    # --- reshape to a dense (rows, 128) slab; only the <128-elem tail is padded ---
    rows = -(-B // _LANES)
    n_pad = rows * _LANES
    if n_pad != B:
        # Neutral tail pad: pred=0, target=0 -> probs=1 -> log(1)=0 -> term = 0.
        p = jnp.pad(p, (0, n_pad - B))
        t = jnp.pad(t, (0, n_pad - B))
    p2 = p.reshape(rows, _LANES)
    t2 = t.reshape(rows, _LANES)

    # --- tiling over rows (no host-side rounding of rows to tile size) ------------
    if rows <= int(tile_rows):
        tile_rows = rows                     # single tile, block == full array dims
    else:
        tile_rows = max(_SUBLANES, (int(tile_rows) // _SUBLANES) * _SUBLANES)
    num_tiles = -(-rows // tile_rows)
    need_mask = (rows % tile_rows) != 0      # only the ragged edge block needs it

    # Fold sign and mean-divisor (true B, not padded size) into constants.
    scale = (1.0 / float(B)) if size_average else 1.0
    a_pos = -float(alpha) * scale
    a_neg = -(1.0 - float(alpha)) * scale

    kernel = functools.partial(
        _focal_loss_kernel, a_pos=a_pos, a_neg=a_neg, gamma=float(gamma),
        tile_rows=tile_rows, valid_rows=rows, need_mask=need_mask,
    )

    partials = pl.pallas_call(
        kernel,
        out_shape=jax.ShapeDtypeStruct((num_tiles, _LANES), jnp.float32),
        grid_spec=pltpu.PrefetchScalarGridSpec(
            num_scalar_prefetch=0,
            grid=(num_tiles,),
            in_specs=[
                pl.BlockSpec((tile_rows, _LANES), lambda i: (i, 0)),
                pl.BlockSpec((tile_rows, _LANES), lambda i: (i, 0)),
            ],
            out_specs=pl.BlockSpec((1, _LANES), lambda i: (i, 0)),
        ),
        compiler_params=pltpu.CompilerParams(
            dimension_semantics=("parallel",),   # independent tiles -> megacore on v7x
            vmem_limit_bytes=48 * 1024 * 1024,   # headroom under v7x's 64 MiB VMEM
        ),
    )(p2, t2)

    # Tiny (num_tiles, 128) finish-up reduction outside the kernel.
    return jnp.sum(partials)


def _focal_loss_ref(pred, target, alpha=0.25, gamma=2, size_average=True):
    # Pure-JAX reference mirroring the PyTorch module (K=1 case).
    B = target.shape[0]
    p = pred.reshape(B).astype(jnp.float32)
    tt = target.reshape(B).astype(jnp.int32)
    probs = jnp.where(tt == 1, p, 1.0 - p)
    probs = jnp.clip(probs, 0.0001, 1.0)
    log_p = jnp.log(probs)
    a = jnp.where(tt == 1, alpha, 1.0 - alpha)
    batch_loss = -a * (1.0 - probs) ** gamma * log_p
    return batch_loss.mean() if size_average else batch_loss.sum()


if __name__ == "__main__":
    key = jax.random.PRNGKey(0)
    k1, k2, k3, k4 = jax.random.split(key, 4)

    # --- small test matching the module's intended use: binary head, (B, 1) pred ---
    B = 8
    pred = jax.nn.sigmoid(jax.random.normal(k1, (B, 1), dtype=jnp.float32))
    target = jax.random.bernoulli(k2, 0.5, (B,)).astype(jnp.int32)

    loss = jax.block_until_ready(focal_loss(pred, target, alpha=0.25, gamma=2,
                                            size_average=True))
    ref = _focal_loss_ref(pred, target)
    assert jnp.allclose(loss, ref, rtol=1e-5, atol=1e-6), (loss, ref)

    # sum-reduction path
    loss_sum = jax.block_until_ready(focal_loss(pred, target, size_average=False))
    ref_sum = _focal_loss_ref(pred, target, size_average=False)
    assert jnp.allclose(loss_sum, ref_sum, rtol=1e-5, atol=1e-6), (loss_sum, ref_sum)

    # small ragged case exercising multi-tile grid + in-kernel edge-block masking
    B2 = 2500  # rows = 20, tile_rows = 8 -> 3 tiles, last one partial
    pred2 = jax.nn.sigmoid(jax.random.normal(k3, (B2,), dtype=jnp.float32))
    target2 = jax.random.bernoulli(k4, 0.5, (B2,)).astype(jnp.int32)
    loss2 = jax.block_until_ready(focal_loss(pred2, target2, tile_rows=8))
    ref2 = _focal_loss_ref(pred2, target2)
    assert jnp.allclose(loss2, ref2, rtol=1e-5, atol=1e-6), (loss2, ref2)

    print("KERNEL_OK")
</pallas_src>

<mosaic_0001>
module attributes {stable_mosaic.version = 11 : i64} {
  func.func @_focal_loss_kernel(%arg0: i32, %arg1: memref<1x128xf32, #tpu.memory_space<vmem>>, %arg2: memref<1x128xi32, #tpu.memory_space<vmem>>, %arg3: memref<1x128xf32, #tpu.memory_space<vmem>>) attributes {dimension_semantics = [#tpu.dimension_semantics<parallel>], iteration_bounds = array<i64: 1>, scalar_prefetch = 0 : i64, scratch_operands = 0 : i64, tpu.core_type = #tpu.core_type<tc>, window_params = [{transform_indices = @transform_0, window_bounds = array<i64: 1, 128>}, {transform_indices = @transform_1, window_bounds = array<i64: 1, 128>}, {transform_indices = @transform_2, window_bounds = array<i64: 1, 128>}]} {
    %c0 = arith.constant 0 : index
    %c0_0 = arith.constant 0 : index
    %0 = vector.load %arg1[%c0, %c0_0] : memref<1x128xf32, #tpu.memory_space<vmem>>, vector<1x128xf32>
    %c0_1 = arith.constant 0 : index
    %c0_2 = arith.constant 0 : index
    %1 = vector.load %arg2[%c0_1, %c0_2] : memref<1x128xi32, #tpu.memory_space<vmem>>, vector<1x128xi32>
    %c0_i32 = arith.constant 0 : i32
    %2 = vector.broadcast %c0_i32 : i32 to vector<1x128xi32>
    %3 = arith.cmpi ne, %1, %2 : vector<1x128xi32>
    %cst = arith.constant 1.000000e+00 : f32
    %4 = vector.broadcast %cst : f32 to vector<1x128xf32>
    %5 = arith.subf %4, %0 : vector<1x128xf32>
    %6 = arith.select %3, %0, %5 : vector<1x128xi1>, vector<1x128xf32>
    %cst_3 = arith.constant 9.99999974E-5 : f32
    %cst_4 = arith.constant 1.000000e+00 : f32
    %7 = vector.broadcast %cst_3 : f32 to vector<1x128xf32>
    %8 = arith.maximumf %7, %6 : vector<1x128xf32>
    %9 = vector.broadcast %cst_4 : f32 to vector<1x128xf32>
    %10 = arith.minimumf %9, %8 : vector<1x128xf32>
    %11 = math.log %10 : vector<1x128xf32>
    %cst_5 = arith.constant 1.000000e+00 : f32
    %12 = vector.broadcast %cst_5 : f32 to vector<1x128xf32>
    %13 = arith.subf %12, %10 : vector<1x128xf32>
    %14 = arith.mulf %13, %13 : vector<1x128xf32>
    %cst_6 = arith.constant -3.125000e-02 : f32
    %cst_7 = arith.constant -9.375000e-02 : f32
    %15 = vector.broadcast %cst_6 : f32 to vector<1x128xf32>
    %16 = vector.broadcast %cst_7 : f32 to vector<1x128xf32>
    %17 = arith.select %3, %15, %16 : vector<1x128xi1>, vector<1x128xf32>
    %18 = arith.mulf %17, %14 : vector<1x128xf32>
    %19 = arith.mulf %18, %11 : vector<1x128xf32>
    %cst_8 = arith.constant dense<0.000000e+00> : vector<128xf32>
    %20 = vector.multi_reduction <add>, %19, %cst_8 [0] : vector<1x128xf32> to vector<128xf32>
    %21 = vector.shape_cast %20 : vector<128xf32> to vector<1x128xf32>
    %c0_9 = arith.constant 0 : index
    %c0_10 = arith.constant 0 : index
    %22 = vector.load %arg3[%c0_9, %c0_10] : memref<1x128xf32, #tpu.memory_space<vmem>>, vector<1x128xf32>
    tpu.vector_store %arg3[%c0_9, %c0_10], %21 {strides = array<i32>} : memref<1x128xf32, #tpu.memory_space<vmem>>, vector<1x128xf32>,
    return
  }
  func.func @transform_0(%arg0: i32) -> (i32, i32) {
    %c0_i32 = arith.constant 0 : i32
    %c0_i32_0 = arith.constant 0 : i32
    return %arg0, %c0_i32 : i32, i32
  }
  func.func @transform_1(%arg0: i32) -> (i32, i32) {
    %c0_i32 = arith.constant 0 : i32
    %c0_i32_0 = arith.constant 0 : i32
    return %arg0, %c0_i32 : i32, i32
  }
  func.func @transform_2(%arg0: i32) -> (i32, i32) {
    %c0_i32 = arith.constant 0 : i32
    %c0_i32_0 = arith.constant 0 : i32
    return %arg0, %c0_i32 : i32, i32
  }
}

</mosaic_0001>

<llo_original>
// kernel: tpu_custom_call.1
$region0: #{tpu_custom_call.1}
  #allocation0 [shape = 'u32[]', space=smem, size = 0x4, offset = 0x4, fixed_abs, tag = 'smem constant byte address 0x4 - core index']
  #allocation1 [shape = 'u32[144,128]{1,0:T(1,128)}', space=vmem, size = 0x12000, scoped, tag = 'internal scratch']
  %s0 = inlined_call_operand.hbm [shape: f32[1,128], index: 0, kind: input, shape index: {}]
  %s1 = inlined_call_operand.vmem [shape: s32[1,128], index: 1, kind: input, shape index: {}]
  %s2 = inlined_call_operand.hbm [shape: f32[1,128], index: 2, kind: output, shape index: {}]
  %s3 = sld [smem:[#allocation0]]
  $region22: #{tpu_custom_call.1} parent=0
    _
  %s5 = ssub.s32 1, %s3
  %s6 = scalar_select 0, %s5, %s3
  $region1: #{tpu_custom_call.1} parent=0
    #allocation2 [shape = 'u8[512]{0}', space=vmem, size = 0x400, scoped, tag = 'input window, operand 0, single buffered']
    #allocation3 [shape = 's32[1]{0}', space=sflag, size = 0x4, scoped, tag = 'scoped memory for tpu_custom_call.1']
    #allocation4 [shape = 's32[1]{0}', space=sflag, size = 0x4, scoped, tag = 'scoped memory for tpu_custom_call.1']
    #allocation5 [shape = 'u8[512]{0}', space=vmem, size = 0x400, scoped, tag = 'output window, operand 0, single buffered']
    %7 = vsyncpa [#allocation3], 0
    %8 = vsyncpa [#allocation4], 0
    // Predicated region
    $region2: #{tpu_custom_call.1} parent=1 // pred_check
      _
    $region3: #{tpu_custom_call.1} parent=1 // pred_check_branch
      %10 = sbr.rel (0) target = $region5
    $region4: #{tpu_custom_call.1} parent=1 // pred_region
      %s12 = ssub.s32 16, 16
      %13 = vsyncadd [#allocation3], %s12
      %s15 = sshll.u32 [#allocation2], 4
      %s16 = int_to_ptr.vmem [resolvable:$true] %s15
      %18 = dma.hbm_to_vmem [thread:$0]  %s0, 16, %s16, [#allocation3]
    $region5: #{tpu_custom_call.1} parent=1 // pred_fallthru
      _
    // Predicated region
    $region6: #{tpu_custom_call.1} parent=1 // pred_check
      _
    $region7: #{tpu_custom_call.1} parent=1 // pred_check_branch
      %20 = sbr.rel (0) target = $region9
    $region8: #{tpu_custom_call.1} parent=1 // pred_region
      _
    $region9: #{tpu_custom_call.1} parent=1 // pred_fallthru
      _
    // Predicated region
    $region10: #{tpu_custom_call.1} parent=1 // pred_check
      _
    $region11: #{tpu_custom_call.1} parent=1 // pred_check_branch
      %22 = sbr.rel (0) target = $region13
    $region12: #{tpu_custom_call.1} parent=1 // pred_region
      %23 = dma.done [#allocation3], 16
    $region13: #{tpu_custom_call.1} parent=1 // pred_fallthru
      _
    %v24 = vld [vmem:[#allocation2] sm:$0x1]
    %v25 = vld [vmem:[%s1] sm:$0x1]
    %vm26 = vcmp.ne.s32.totalorder %v25, 0
    %v27 = vsub.f32 1.0, %v24
    %v28 = vsel %vm26, %v24, %v27
    %v29 = vmax.f32 %v28, 0.0001
    %v30 = vmin.f32 %v29, 1.0
    %v31 = vlog2.pop %v30
    %v32 = vmul.f32 %v31, 0.6931472
    %v33 = vsub.f32 1.0, %v30
    %v34 = vmul.f32 %v33, %v33
    %v35 = vsel %vm26, -0.03125, -0.09375
    %v36 = vmul.f32 %v35, %v34
    %v37 = vmul.f32 %v36, %v32
    %v38 = vadd.f32 %v37, 0.0
    %39 = vst [vmem:[#allocation5] sm:$0x1] %v38
    // Predicated region
    $region14: #{tpu_custom_call.1} parent=1 // pred_check
      _
    $region15: #{tpu_custom_call.1} parent=1 // pred_check_branch
      %41 = sbr.rel (0) target = $region17
    $region16: #{tpu_custom_call.1} parent=1 // pred_region
      %s43 = ssub.s32 16, 16
      %44 = vsyncadd [#allocation4], %s43
      %s46 = sshll.u32 [#allocation5], 4
      %s47 = int_to_ptr.vmem [resolvable:$true] %s46
      %49 = dma.vmem_to_hbm [thread:$0]  %s47, 16, %s2, [#allocation4]
    $region17: #{tpu_custom_call.1} parent=1 // pred_fallthru
      _
    // Predicated region
    $region18: #{tpu_custom_call.1} parent=1 // pred_check
      _
    $region19: #{tpu_custom_call.1} parent=1 // pred_check_branch
      %51 = sbr.rel (0) target = $region21
    $region20: #{tpu_custom_call.1} parent=1 // pred_region
      %52 = dma.done [#allocation4], 16
    $region21: #{tpu_custom_call.1} parent=1 // pred_fallthru
      _
    %53 = vsyncpa [#allocation3], 1
    %54 = vsyncpa [#allocation4], 1

</llo_original>
